<compile_context>
chip_gen: v7x
topology: tpu7x:2x2x1
jax: 0.10.0
libtpu: 0.0.40
codegen_flags: <defaults>
</compile_context>

<pallas_src>
from functools import partial

import jax
import jax.numpy as jnp
from jax.experimental import pallas as pl
from jax.experimental.pallas import tpu as pltpu

LANE = 128     # TPU lane width; C_out is padded once to a multiple of this.
TM_MAX = 512   # rows (flattened spatial positions) per grid step for large M.


def conv1x1_kernel(x_ref, w_ref, b_ref, o_ref):
    # x_ref: (tm, C_in) f32, w_ref: (C_in, C_out_pad) bf16,
    # b_ref: (1, C_out_pad) f32, o_ref: (tm, C_out_pad) f32.
    x = x_ref[...].astype(w_ref.dtype)  # cheap VPU cast, hidden under DMA
    acc = jnp.dot(x, w_ref[...], preferred_element_type=jnp.float32)
    o_ref[...] = (acc + b_ref[...]).astype(o_ref.dtype)


def prepare_conv1x1_params(weight, bias, *, weight_dtype=jnp.bfloat16):
    """One-time init: weight (C_out, C_in, 1, 1) -> bf16 (C_in, C_out_pad); bias -> f32 (1, C_out_pad)."""
    c_out, c_in = weight.shape[0], weight.shape[1]
    c_out_pad = ((c_out + LANE - 1) // LANE) * LANE
    w2d = jnp.transpose(weight.reshape(c_out, c_in), (1, 0))              # (C_in, C_out)
    w2d = jnp.pad(w2d, ((0, 0), (0, c_out_pad - c_out)))                  # (C_in, C_out_pad)
    w2d = w2d.astype(weight_dtype)
    b2d = jnp.pad(bias, (0, c_out_pad - c_out)).reshape(1, c_out_pad)
    b2d = b2d.astype(jnp.float32)                                         # bias add stays f32
    return w2d, b2d


@partial(jax.jit, static_argnames=("c_out",))
def conv2d_1x1(x_nchw, w_packed, b_packed, *, c_out):
    """x_nchw: (N, C_in, H, W); w_packed: (C_in, C_out_pad) bf16; b_packed: (1, C_out_pad) f32."""
    n, c_in, h, w = x_nchw.shape
    c_out_pad = w_packed.shape[1]
    m = n * h * w

    if h == 1 and w == 1:
        # Pure reshape — no transpose, no copy (this module's case).
        x2d = x_nchw.reshape(m, c_in)
    else:
        # TODO(synk): for real feature maps keep the surrounding model
        # channels-last so this transpose (and the inverse below) disappears.
        x2d = jnp.transpose(x_nchw, (0, 2, 3, 1)).reshape(m, c_in)

    # M tiling: one full-extent block when m <= TM_MAX, else TM_MAX-row tiles
    # (m padded up to a multiple of TM_MAX so blocks divide evenly).
    if m <= TM_MAX:
        tm, m_pad = m, m
    else:
        tm = TM_MAX
        m_pad = ((m + TM_MAX - 1) // TM_MAX) * TM_MAX
        if m_pad != m:
            x2d = jnp.pad(x2d, ((0, m_pad - m), (0, 0)))

    out2d = pl.pallas_call(
        conv1x1_kernel,
        out_shape=jax.ShapeDtypeStruct((m_pad, c_out_pad), x_nchw.dtype),
        grid=(m_pad // tm,),
        in_specs=[
            pl.BlockSpec((tm, c_in), lambda i: (i, 0)),         # activations, tiled over M
            pl.BlockSpec((c_in, c_out_pad), lambda i: (0, 0)),  # weight: resident across grid
            pl.BlockSpec((1, c_out_pad), lambda i: (0, 0)),     # bias: resident across grid
        ],
        out_specs=pl.BlockSpec((tm, c_out_pad), lambda i: (i, 0)),
        compiler_params=pltpu.CompilerParams(
            dimension_semantics=("parallel",),
            vmem_limit_bytes=32 * 1024 * 1024,
        ),
    )(x2d, w_packed, b_packed)

    # Strip M padding (if any) and the lane padding; back to NCHW.
    out2d = out2d[:m, :c_out]
    if h == 1 and w == 1:
        return out2d.reshape(n, c_out, h, w)  # pure reshape back to NCHW
    return jnp.transpose(out2d.reshape(n, h, w, c_out), (0, 3, 1, 2))


if __name__ == "__main__":
    key = jax.random.PRNGKey(0)
    k_x, k_w, k_b = jax.random.split(key, 3)

    N, C_IN, H, W = 1, 56, 1, 1
    C_OUT = 1344

    # Deterministic synthetic parameters matching Conv2d(56, 1344, kernel=1).
    x = jax.random.normal(k_x, (N, C_IN, H, W), dtype=jnp.float32)
    weight = jax.random.normal(k_w, (C_OUT, C_IN, 1, 1), dtype=jnp.float32) * 0.05
    bias = jax.random.normal(k_b, (C_OUT,), dtype=jnp.float32) * 0.05

    # One-time (init) layout prep: bf16 (C_in, C_out_pad=1408), f32 (1, 1408) bias.
    w_packed, b_packed = jax.block_until_ready(prepare_conv1x1_params(weight, bias))

    out = jax.block_until_ready(conv2d_1x1(x, w_packed, b_packed, c_out=C_OUT))

    # Reference check (plain JAX f32) — tolerance accounts for bf16 operand cast.
    ref = (weight.reshape(C_OUT, C_IN) @ x.reshape(C_IN, 1)).reshape(1, C_OUT, 1, 1) \
        + bias.reshape(1, C_OUT, 1, 1)
    assert out.shape == (N, C_OUT, H, W)
    assert jnp.allclose(out, ref, atol=5e-2, rtol=5e-2), float(jnp.max(jnp.abs(out - ref)))

    print("KERNEL_OK")
</pallas_src>

<mosaic_0001>
module attributes {stable_mosaic.version = 11 : i64} {
  func.func @conv1x1_kernel(%arg0: i32, %arg1: memref<1x56xf32, #tpu.memory_space<vmem>>, %arg2: memref<56x1408xbf16, #tpu.memory_space<vmem>>, %arg3: memref<1x1408xf32, #tpu.memory_space<vmem>>, %arg4: memref<1x1408xf32, #tpu.memory_space<vmem>>) attributes {dimension_semantics = [#tpu.dimension_semantics<parallel>], iteration_bounds = array<i64: 1>, scalar_prefetch = 0 : i64, scratch_operands = 0 : i64, tpu.core_type = #tpu.core_type<tc>, window_params = [{transform_indices = @transform_0, window_bounds = array<i64: 1, 56>}, {pipeline_mode = #tpu.pipeline_mode<synchronous>, transform_indices = @transform_1, window_bounds = array<i64: 56, 1408>}, {pipeline_mode = #tpu.pipeline_mode<synchronous>, transform_indices = @transform_2, window_bounds = array<i64: 1, 1408>}, {transform_indices = @transform_3, window_bounds = array<i64: 1, 1408>}]} {
    %c0 = arith.constant 0 : index
    %c0_0 = arith.constant 0 : index
    %0 = vector.load %arg1[%c0, %c0_0] : memref<1x56xf32, #tpu.memory_space<vmem>>, vector<1x56xf32>
    %1 = arith.truncf %0 : vector<1x56xf32> to vector<1x56xbf16>
    %c0_1 = arith.constant 0 : index
    %c0_2 = arith.constant 0 : index
    %2 = vector.load %arg2[%c0_1, %c0_2] : memref<56x1408xbf16, #tpu.memory_space<vmem>>, vector<56x1408xbf16>
    %cst = arith.constant dense<0.000000e+00> : vector<1x1408xf32>
    %3 = tpu.matmul %1, %2, %cst {dimension_numbers = #tpu.dot_dimension_numbers<[1], [0], [0], [1], [0, 0, 1, 1], [], []>} : vector<1x56xbf16>, vector<56x1408xbf16>, vector<1x1408xf32> -> vector<1x1408xf32>
    %c0_3 = arith.constant 0 : index
    %c0_4 = arith.constant 0 : index
    %4 = vector.load %arg3[%c0_3, %c0_4] : memref<1x1408xf32, #tpu.memory_space<vmem>>, vector<1x1408xf32>
    %5 = arith.addf %3, %4 : vector<1x1408xf32>
    %c0_5 = arith.constant 0 : index
    %c0_6 = arith.constant 0 : index
    %6 = vector.load %arg4[%c0_5, %c0_6] : memref<1x1408xf32, #tpu.memory_space<vmem>>, vector<1x1408xf32>
    tpu.vector_store %arg4[%c0_5, %c0_6], %5 {strides = array<i32>} : memref<1x1408xf32, #tpu.memory_space<vmem>>, vector<1x1408xf32>,
    return
  }
  func.func @transform_0(%arg0: i32) -> (i32, i32) {
    %c0_i32 = arith.constant 0 : i32
    %c0_i32_0 = arith.constant 0 : i32
    return %arg0, %c0_i32 : i32, i32
  }
  func.func @transform_1(%arg0: i32) -> (i32, i32) {
    %c0_i32 = arith.constant 0 : i32
    %c0_i32_0 = arith.constant 0 : i32
    %c0_i32_1 = arith.constant 0 : i32
    return %c0_i32, %c0_i32_0 : i32, i32
  }
  func.func @transform_2(%arg0: i32) -> (i32, i32) {
    %c0_i32 = arith.constant 0 : i32
    %c0_i32_0 = arith.constant 0 : i32
    %c0_i32_1 = arith.constant 0 : i32
    return %c0_i32, %c0_i32_0 : i32, i32
  }
  func.func @transform_3(%arg0: i32) -> (i32, i32) {
    %c0_i32 = arith.constant 0 : i32
    %c0_i32_0 = arith.constant 0 : i32
    return %arg0, %c0_i32 : i32, i32
  }
}

</mosaic_0001>

<llo_original>
// kernel: conv2d_1x1.1
$region0: #{conv2d_1x1.1}
  #allocation0 [shape = 'u32[]', space=smem, size = 0x4, offset = 0x4, fixed_abs, tag = 'smem constant byte address 0x4 - core index']
  #allocation1 [shape = 'u32[144,128]{1,0:T(1,128)}', space=vmem, size = 0x12000, scoped, tag = 'internal scratch']
  %s0 = inlined_call_operand.hbm [shape: f32[1,56], index: 0, kind: input, shape index: {}]
  %s1 = inlined_call_operand.hbm [shape: bf16[56,1408], index: 1, kind: input, shape index: {}]
  %s2 = inlined_call_operand.vmem [shape: f32[1,1408], index: 2, kind: input, shape index: {}]
  %s3 = inlined_call_operand.vmem [shape: f32[1,1408], index: 3, kind: output, shape index: {}]
  %s4 = sld [smem:[#allocation0]]
  $region30: #{conv2d_1x1.1} parent=0
    _
  %s6 = ssub.s32 1, %s4
  %s7 = scalar_select 0, %s6, %s4
  $region1: #{conv2d_1x1.1} parent=0
    #allocation2 [shape = 'u8[512]{0}', space=vmem, size = 0x400, scoped, tag = 'input window, operand 0, single buffered']
    #allocation3 [shape = 's32[1]{0}', space=sflag, size = 0x4, scoped, tag = 'scoped memory for conv2d_1x1.1']
    #allocation4 [shape = 'u8[157696]{0}', space=vmem, size = 0x26800, scoped, tag = 'input window, operand 1, single buffered']
    #allocation5 [shape = 's32[1]{0}', space=sflag, size = 0x4, scoped, tag = 'scoped memory for conv2d_1x1.1']
    %8 = vsyncpa [#allocation3], 0
    %9 = vsyncpa [#allocation5], 0
    // Predicated region
    $region2: #{conv2d_1x1.1} parent=1 // pred_check
      _
    $region3: #{conv2d_1x1.1} parent=1 // pred_check_branch
      %11 = sbr.rel (0) target = $region5
    $region4: #{conv2d_1x1.1} parent=1 // pred_region
      %s13 = ssub.s32 16, 16
      %14 = vsyncadd [#allocation3], %s13
      %s16 = sshll.u32 [#allocation2], 4
      %s17 = int_to_ptr.vmem [resolvable:$true] %s16
      %19 = dma.hbm_to_vmem [thread:$0]  %s0, 16, %s17, [#allocation3]
    $region5: #{conv2d_1x1.1} parent=1 // pred_fallthru
      _
    // Predicated region
    $region6: #{conv2d_1x1.1} parent=1 // pred_check
      _
    $region7: #{conv2d_1x1.1} parent=1 // pred_check_branch
      %21 = sbr.rel (0) target = $region9
    $region8: #{conv2d_1x1.1} parent=1 // pred_region
      %s23 = ssub.s32 4928, 4928
      %24 = vsyncadd [#allocation5], %s23
      %s25 = sshll.u32 [#allocation4], 4
      %s26 = int_to_ptr.vmem [resolvable:$true] %s25
      %31 = dma.hbm_to_vmem [thread:$0]  %s1, 4928, %s26, [#allocation5], 704, 704, 44
    $region9: #{conv2d_1x1.1} parent=1 // pred_fallthru
      _
    // Predicated region
    $region10: #{conv2d_1x1.1} parent=1 // pred_check
      _
    $region11: #{conv2d_1x1.1} parent=1 // pred_check_branch
      %33 = sbr.rel (0) target = $region13
    $region12: #{conv2d_1x1.1} parent=1 // pred_region
      _
    $region13: #{conv2d_1x1.1} parent=1 // pred_fallthru
      _
    // Predicated region
    $region14: #{conv2d_1x1.1} parent=1 // pred_check
      _
    $region15: #{conv2d_1x1.1} parent=1 // pred_check_branch
      %35 = sbr.rel (0) target = $region17
    $region16: #{conv2d_1x1.1} parent=1 // pred_region
      %36 = dma.done [#allocation3], 16
    $region17: #{conv2d_1x1.1} parent=1 // pred_fallthru
      _
    // Predicated region
    $region18: #{conv2d_1x1.1} parent=1 // pred_check
      _
    $region19: #{conv2d_1x1.1} parent=1 // pred_check_branch
      %38 = sbr.rel (0) target = $region21
    $region20: #{conv2d_1x1.1} parent=1 // pred_region
      %39 = dma.done [#allocation5], 4928
    $region21: #{conv2d_1x1.1} parent=1 // pred_fallthru
      _
    %v41 = vld [vmem:[#allocation2] sm:$0x1]
    %v42 = vpack.c.bf16 %v41, %v41
    %v43 = vld [vmem:[#allocation4] sm:$0xff]
    %v44 = vld [vmem:[#allocation4 + $0x8] sm:$0xff]
    %v45 = vld [vmem:[#allocation4 + $0x10] sm:$0xff]
    %v46 = vld [vmem:[#allocation4 + $0x18] sm:$0xff]
    %v47 = vld [vmem:[#allocation4 + $0x20] sm:$0xff]
    %v48 = vld [vmem:[#allocation4 + $0x28] sm:$0xf]
    %v49 = vld [vmem:[#allocation4 + $0x2c] sm:$0xff]
    %v50 = vld [vmem:[#allocation4 + $0x34] sm:$0xff]
    %v51 = vld [vmem:[#allocation4 + $0x3c] sm:$0xff]
    %v52 = vld [vmem:[#allocation4 + $0x44] sm:$0xff]
    %v53 = vld [vmem:[#allocation4 + $0x4c] sm:$0xff]
    %v54 = vld [vmem:[#allocation4 + $0x54] sm:$0xf]
    %v55 = vld [vmem:[#allocation4 + $0x58] sm:$0xff]
    %v56 = vld [vmem:[#allocation4 + $0x60] sm:$0xff]
    %v57 = vld [vmem:[#allocation4 + $0x68] sm:$0xff]
    %v58 = vld [vmem:[#allocation4 + $0x70] sm:$0xff]
    %v59 = vld [vmem:[#allocation4 + $0x78] sm:$0xff]
    %v60 = vld [vmem:[#allocation4 + $0x80] sm:$0xf]
    %v61 = vld [vmem:[#allocation4 + $0x84] sm:$0xff]
    %v62 = vld [vmem:[#allocation4 + $0x8c] sm:$0xff]
    %v63 = vld [vmem:[#allocation4 + $0x94] sm:$0xff]
    %v64 = vld [vmem:[#allocation4 + $0x9c] sm:$0xff]
    %v65 = vld [vmem:[#allocation4 + $0xa4] sm:$0xff]
    %v66 = vld [vmem:[#allocation4 + $0xac] sm:$0xf]
    %v67 = vld [vmem:[#allocation4 + $0xb0] sm:$0xff]
    %v68 = vld [vmem:[#allocation4 + $0xb8] sm:$0xff]
    %v69 = vld [vmem:[#allocation4 + $0xc0] sm:$0xff]
    %v70 = vld [vmem:[#allocation4 + $0xc8] sm:$0xff]
    %v71 = vld [vmem:[#allocation4 + $0xd0] sm:$0xff]
    %v72 = vld [vmem:[#allocation4 + $0xd8] sm:$0xf]
    %v73 = vld [vmem:[#allocation4 + $0xdc] sm:$0xff]
    %v74 = vld [vmem:[#allocation4 + $0xe4] sm:$0xff]
    %v75 = vld [vmem:[#allocation4 + $0xec] sm:$0xff]
    %v76 = vld [vmem:[#allocation4 + $0xf4] sm:$0xff]
    %v77 = vld [vmem:[#allocation4 + $0xfc] sm:$0xff]
    %v78 = vld [vmem:[#allocation4 + $0x104] sm:$0xf]
    %v79 = vld [vmem:[#allocation4 + $0x108] sm:$0xff]
    %v80 = vld [vmem:[#allocation4 + $0x110] sm:$0xff]
    %v81 = vld [vmem:[#allocation4 + $0x118] sm:$0xff]
    %v82 = vld [vmem:[#allocation4 + $0x120] sm:$0xff]
    %v83 = vld [vmem:[#allocation4 + $0x128] sm:$0xff]
    %v84 = vld [vmem:[#allocation4 + $0x130] sm:$0xf]
    %v85 = vld [vmem:[%s2] sm:$0xff]
    %v86 = vld [vmem:[%s2 + $0x8] sm:$0x7]
    %v129 = vunpack.c.l.b16 %v43
    %v130 = vunpack.c.h.b16 %v43
    %v131 = vunpack.c.l.b16 %v44
    %v132 = vunpack.c.h.b16 %v44
    %v133 = vunpack.c.l.b16 %v45
    %v134 = vunpack.c.h.b16 %v45
    %v135 = vunpack.c.l.b16 %v46
    %v136 = vunpack.c.h.b16 %v46
    %v137 = vunpack.c.l.b16 %v47
    %v138 = vunpack.c.h.b16 %v47
    %v139 = vunpack.c.l.b16 %v48
    %v140 = vunpack.c.l.b16 %v49
    %v141 = vunpack.c.h.b16 %v49
    %v142 = vunpack.c.l.b16 %v50
    %v143 = vunpack.c.h.b16 %v50
    %v144 = vunpack.c.l.b16 %v51
    %v145 = vunpack.c.h.b16 %v51
    %v146 = vunpack.c.l.b16 %v52
    %v147 = vunpack.c.h.b16 %v52
    %v148 = vunpack.c.l.b16 %v53
    %v149 = vunpack.c.h.b16 %v53
    %v150 = vunpack.c.l.b16 %v54
    %v151 = vunpack.c.l.b16 %v55
    %v152 = vunpack.c.h.b16 %v55
    %v153 = vunpack.c.l.b16 %v56
    %v154 = vunpack.c.h.b16 %v56
    %v155 = vunpack.c.l.b16 %v57
    %v156 = vunpack.c.h.b16 %v57
    %v157 = vunpack.c.l.b16 %v58
    %v158 = vunpack.c.h.b16 %v58
    %v159 = vunpack.c.l.b16 %v59
    %v160 = vunpack.c.h.b16 %v59
    %v161 = vunpack.c.l.b16 %v60
    %v162 = vunpack.c.l.b16 %v61
    %v163 = vunpack.c.h.b16 %v61
    %v164 = vunpack.c.l.b16 %v62
    %v165 = vunpack.c.h.b16 %v62
    %v166 = vunpack.c.l.b16 %v63
    %v167 = vunpack.c.h.b16 %v63
    %v168 = vunpack.c.l.b16 %v64
    %v169 = vunpack.c.h.b16 %v64
    %v170 = vunpack.c.l.b16 %v65
    %v171 = vunpack.c.h.b16 %v65
    %v172 = vunpack.c.l.b16 %v66
    %v173 = vunpack.c.l.b16 %v67
    %v174 = vunpack.c.h.b16 %v67
    %v175 = vunpack.c.l.b16 %v68
    %v176 = vunpack.c.h.b16 %v68
    %v177 = vunpack.c.l.b16 %v69
    %v178 = vunpack.c.h.b16 %v69
    %v179 = vunpack.c.l.b16 %v70
    %v180 = vunpack.c.h.b16 %v70
    %v181 = vunpack.c.l.b16 %v71
    %v182 = vunpack.c.h.b16 %v71
    %v183 = vunpack.c.l.b16 %v72
    %v184 = vunpack.c.l.b16 %v73
    %v185 = vunpack.c.h.b16 %v73
    %v186 = vunpack.c.l.b16 %v74
    %v187 = vunpack.c.h.b16 %v74
    %v188 = vunpack.c.l.b16 %v75
    %v189 = vunpack.c.h.b16 %v75
    %v190 = vunpack.c.l.b16 %v76
    %v191 = vunpack.c.h.b16 %v76
    %v192 = vunpack.c.l.b16 %v77
    %v193 = vunpack.c.h.b16 %v77
    %v194 = vunpack.c.l.b16 %v78
    %v195 = vunpack.c.l.b16 %v79
    %v196 = vunpack.c.h.b16 %v79
    %v197 = vunpack.c.l.b16 %v80
    %v198 = vunpack.c.h.b16 %v80
    %v199 = vunpack.c.l.b16 %v81
    %v200 = vunpack.c.h.b16 %v81
    %v201 = vunpack.c.l.b16 %v82
    %v202 = vunpack.c.h.b16 %v82
    %v203 = vunpack.c.l.b16 %v83
    %v204 = vunpack.c.h.b16 %v83
    %v205 = vunpack.c.l.b16 %v84
    %v206 = vpack.c.b16 %v140, %v129
    %v207 = vpack.c.b16 %v141, %v130
    %v208 = vpack.c.b16 %v142, %v131
    %v209 = vpack.c.b16 %v143, %v132
    %v210 = vpack.c.b16 %v144, %v133
    %v211 = vpack.c.b16 %v145, %v134
    %v212 = vpack.c.b16 %v146, %v135
    %v213 = vpack.c.b16 %v147, %v136
    %v214 = vpack.c.b16 %v148, %v137
    %v215 = vpack.c.b16 %v149, %v138
    %v216 = vpack.c.b16 %v150, %v139
    %v217 = vpack.c.b16 %v162, %v151
    %v218 = vpack.c.b16 %v163, %v152
    %v219 = vpack.c.b16 %v164, %v153
    %v220 = vpack.c.b16 %v165, %v154
    %v221 = vpack.c.b16 %v166, %v155
    %v222 = vpack.c.b16 %v167, %v156
    %v223 = vpack.c.b16 %v168, %v157
    %v224 = vpack.c.b16 %v169, %v158
    %v225 = vpack.c.b16 %v170, %v159
    %v226 = vpack.c.b16 %v171, %v160
    %v227 = vpack.c.b16 %v172, %v161
    %v228 = vpack.c.b16 %v184, %v173
    %v229 = vpack.c.b16 %v185, %v174
    %v230 = vpack.c.b16 %v186, %v175
    %v231 = vpack.c.b16 %v187, %v176
    %v232 = vpack.c.b16 %v188, %v177
    %v233 = vpack.c.b16 %v189, %v178
    %v234 = vpack.c.b16 %v190, %v179
    %v235 = vpack.c.b16 %v191, %v180
    %v236 = vpack.c.b16 %v192, %v181
    %v237 = vpack.c.b16 %v193, %v182
    %v238 = vpack.c.b16 %v194, %v183
    %v239 = vpack.c.b16 %v195, %v195
    %v240 = vpack.c.b16 %v196, %v196
    %v241 = vpack.c.b16 %v197, %v197
    %v242 = vpack.c.b16 %v198, %v198
    %v243 = vpack.c.b16 %v199, %v199
    %v244 = vpack.c.b16 %v200, %v200
    %v245 = vpack.c.b16 %v201, %v201
    %v246 = vpack.c.b16 %v202, %v202
    %v247 = vpack.c.b16 %v203, %v203
    %v248 = vpack.c.b16 %v204, %v204
    %v249 = vpack.c.b16 %v205, %v205
    %v285 = vlaneseq
    %v286 = vshrl.u32 %v285, 7
    %v287 = vsub.s32 0, %v286
    %v288 = vrot.slane %v85, %v287
    %v289 = vlaneseq
    %v290 = vshrl.u32 %v289, 7
    %v291 = vsub.s32 1, %v290
    %v292 = vrot.slane %v85, %v291
    %v293 = vlaneseq
    %v294 = vshrl.u32 %v293, 7
    %v295 = vsub.s32 2, %v294
    %v296 = vrot.slane %v85, %v295
    %v297 = vlaneseq
    %v298 = vshrl.u32 %v297, 7
    %v299 = vsub.s32 3, %v298
    %v300 = vrot.slane %v85, %v299
    %v301 = vlaneseq
    %v302 = vshrl.u32 %v301, 7
    %v303 = vsub.s32 4, %v302
    %v304 = vrot.slane %v85, %v303
    %v305 = vlaneseq
    %v306 = vshrl.u32 %v305, 7
    %v307 = vsub.s32 5, %v306
    %v308 = vrot.slane %v85, %v307
    %v309 = vlaneseq
    %v310 = vshrl.u32 %v309, 7
    %v311 = vsub.s32 6, %v310
    %v312 = vrot.slane %v85, %v311
    %v313 = vlaneseq
    %v314 = vshrl.u32 %v313, 7
    %v315 = vsub.s32 7, %v314
    %v316 = vrot.slane %v85, %v315
    %v317 = vlaneseq
    %v318 = vshrl.u32 %v317, 7
    %v319 = vsub.s32 0, %v318
    %v320 = vrot.slane %v86, %v319
    %v321 = vlaneseq
    %v322 = vshrl.u32 %v321, 7
    %v323 = vsub.s32 1, %v322
    %v324 = vrot.slane %v86, %v323
    %v325 = vlaneseq
    %v326 = vshrl.u32 %v325, 7
    %v327 = vsub.s32 2, %v326
    %v328 = vrot.slane %v86, %v327
    %vm340 = vcmask 457728
    %v342 = vsel %vm340, %v42, 0
    %vm344 = vcmask 1043456
    %v346 = vsel %vm344, %v239, 0
    %v349 = vsel %vm344, %v240, 0
    %v352 = vsel %vm344, %v241, 0
    %v355 = vsel %vm344, %v242, 0
    %v358 = vsel %vm344, %v243, 0
    %v361 = vsel %vm344, %v244, 0
    %v364 = vsel %vm344, %v245, 0
    %v367 = vsel %vm344, %v246, 0
    %v370 = vsel %vm344, %v247, 0
    %v373 = vsel %vm344, %v248, 0
    %v376 = vsel %vm344, %v249, 0
    %378 = vmatprep.subr.bf16.mxu0 %v207
    %379 = vmatpush1.bf16.msra.mxu0 %v206
    %380 = vmatprep.subr.bf16.mxu0 %v218
    %381 = vmatpush1.bf16.msra.mxu0 %v217
    %382 = vmatprep.subr.bf16.mxu0 %v229
    %383 = vmatpush1.bf16.msra.mxu0 %v228
    %384 = vmatprep.subr.bf16.mxu0 %v349
    %385 = vmatpush1.bf16.msra.mxu0 %v346
    %386 = vmatprep.subr.bf16.mxu0 0
    %387 = vmatpush1.bf16.msra.mxu0 0
    %388 = vmatprep.subr.bf16.mxu0 0
    %389 = vmatpush1.bf16.msra.mxu0 0
    %390 = vmatprep.subr.bf16.mxu0 0
    %391 = vmatpush1.bf16.msra.mxu0 0
    %392 = vmatprep.subr.bf16.mxu0 0
    %393 = vmatpush1.bf16.msra.mxu0 0
    %394 = vmatprep.subr.bf16.mxu0 0
    %395 = vmatpush1.bf16.msra.mxu0 0
    %396 = vmatprep.subr.bf16.mxu0 0
    %397 = vmatpush1.bf16.msra.mxu0 0
    %398 = vmatprep.subr.bf16.mxu0 0
    %399 = vmatpush1.bf16.msra.mxu0 0
    %400 = vmatprep.subr.bf16.mxu0 0
    %401 = vmatpush1.bf16.msra.mxu0 0
    %402 = vmatprep.subr.bf16.mxu0 0
    %403 = vmatpush1.bf16.msra.mxu0 0
    %404 = vmatprep.subr.bf16.mxu0 0
    %405 = vmatpush1.bf16.msra.mxu0 0
    %406 = vmatprep.subr.bf16.mxu0 0
    %407 = vmatpush1.bf16.msra.mxu0 0
    %408 = vmatprep.subr.bf16.mxu0 0
    %409 = vmatpush1.bf16.msra.mxu0 0
    %410 = vmatprep.mubr.bf16.mxu0 0
    %411 = vmatmul.mubr.bf16.gmra.mrb[0].mxu0 %v342
    %v412 = vpop.f32.mrb[0].mxu0
    %v413 = vadd.f32 %v288, %v412
    %v414 = vpop.f32.mrb[0].mxu0
    %v415 = vadd.f32 %v292, %v414
    %v416 = vpop.f32.mrb[0].mxu0
    %v417 = vpop.f32.mrb[0].mxu0
    %418 = vdwg.mxu0
    %419 = vmatprep.subr.bf16.mxu0 %v209
    %420 = vmatpush1.bf16.msra.mxu0 %v208
    %421 = vmatprep.subr.bf16.mxu0 %v220
    %422 = vmatpush1.bf16.msra.mxu0 %v219
    %423 = vmatprep.subr.bf16.mxu0 %v231
    %424 = vmatpush1.bf16.msra.mxu0 %v230
    %425 = vmatprep.subr.bf16.mxu0 %v355
    %426 = vmatpush1.bf16.msra.mxu0 %v352
    %427 = vmatprep.subr.bf16.mxu0 0
    %428 = vmatpush1.bf16.msra.mxu0 0
    %429 = vmatprep.subr.bf16.mxu0 0
    %430 = vmatpush1.bf16.msra.mxu0 0
    %431 = vmatprep.subr.bf16.mxu0 0
    %432 = vmatpush1.bf16.msra.mxu0 0
    %433 = vmatprep.subr.bf16.mxu0 0
    %434 = vmatpush1.bf16.msra.mxu0 0
    %435 = vmatprep.subr.bf16.mxu0 0
    %436 = vmatpush1.bf16.msra.mxu0 0
    %437 = vmatprep.subr.bf16.mxu0 0
    %438 = vmatpush1.bf16.msra.mxu0 0
    %439 = vmatprep.subr.bf16.mxu0 0
    %440 = vmatpush1.bf16.msra.mxu0 0
    %441 = vmatprep.subr.bf16.mxu0 0
    %442 = vmatpush1.bf16.msra.mxu0 0
    %443 = vmatprep.subr.bf16.mxu0 0
    %444 = vmatpush1.bf16.msra.mxu0 0
    %445 = vmatprep.subr.bf16.mxu0 0
    %446 = vmatpush1.bf16.msra.mxu0 0
    %447 = vmatprep.subr.bf16.mxu0 0
    %448 = vmatpush1.bf16.msra.mxu0 0
    %449 = vmatprep.subr.bf16.mxu0 0
    %450 = vmatpush1.bf16.msra.mxu0 0
    %451 = vmatprep.mubr.bf16.mxu0 0
    %452 = vmatmul.mubr.bf16.gmra.mrb[0].mxu0 %v342
    %v453 = vpop.f32.mrb[0].mxu0
    %v454 = vadd.f32 %v296, %v453
    %v455 = vpop.f32.mrb[0].mxu0
    %v456 = vadd.f32 %v300, %v455
    %v457 = vpop.f32.mrb[0].mxu0
    %v458 = vpop.f32.mrb[0].mxu0
    %459 = vdwg.mxu0
    %460 = vmatprep.subr.bf16.mxu0 %v211
    %461 = vmatpush1.bf16.msra.mxu0 %v210
    %462 = vmatprep.subr.bf16.mxu0 %v222
    %463 = vmatpush1.bf16.msra.mxu0 %v221
    %464 = vmatprep.subr.bf16.mxu0 %v233
    %465 = vmatpush1.bf16.msra.mxu0 %v232
    %466 = vmatprep.subr.bf16.mxu0 %v361
    %467 = vmatpush1.bf16.msra.mxu0 %v358
    %468 = vmatprep.subr.bf16.mxu0 0
    %469 = vmatpush1.bf16.msra.mxu0 0
    %470 = vmatprep.subr.bf16.mxu0 0
    %471 = vmatpush1.bf16.msra.mxu0 0
    %472 = vmatprep.subr.bf16.mxu0 0
    %473 = vmatpush1.bf16.msra.mxu0 0
    %474 = vmatprep.subr.bf16.mxu0 0
    %475 = vmatpush1.bf16.msra.mxu0 0
    %476 = vmatprep.subr.bf16.mxu0 0
    %477 = vmatpush1.bf16.msra.mxu0 0
    %478 = vmatprep.subr.bf16.mxu0 0
    %479 = vmatpush1.bf16.msra.mxu0 0
    %480 = vmatprep.subr.bf16.mxu0 0
    %481 = vmatpush1.bf16.msra.mxu0 0
    %482 = vmatprep.subr.bf16.mxu0 0
    %483 = vmatpush1.bf16.msra.mxu0 0
    %484 = vmatprep.subr.bf16.mxu0 0
    %485 = vmatpush1.bf16.msra.mxu0 0
    %486 = vmatprep.subr.bf16.mxu0 0
    %487 = vmatpush1.bf16.msra.mxu0 0
    %488 = vmatprep.subr.bf16.mxu0 0
    %489 = vmatpush1.bf16.msra.mxu0 0
    %490 = vmatprep.subr.bf16.mxu0 0
    %491 = vmatpush1.bf16.msra.mxu0 0
    %492 = vmatprep.mubr.bf16.mxu0 0
    %493 = vmatmul.mubr.bf16.gmra.mrb[0].mxu0 %v342
    %v494 = vpop.f32.mrb[0].mxu0
    %v495 = vadd.f32 %v304, %v494
    %v496 = vpop.f32.mrb[0].mxu0
    %v497 = vadd.f32 %v308, %v496
    %v498 = vpop.f32.mrb[0].mxu0
    %v499 = vpop.f32.mrb[0].mxu0
    %500 = vdwg.mxu0
    %501 = vmatprep.subr.bf16.mxu0 %v213
    %502 = vmatpush1.bf16.msra.mxu0 %v212
    %503 = vmatprep.subr.bf16.mxu0 %v224
    %504 = vmatpush1.bf16.msra.mxu0 %v223
    %505 = vmatprep.subr.bf16.mxu0 %v235
    %506 = vmatpush1.bf16.msra.mxu0 %v234
    %507 = vmatprep.subr.bf16.mxu0 %v367
    %508 = vmatpush1.bf16.msra.mxu0 %v364
    %509 = vmatprep.subr.bf16.mxu0 0
    %510 = vmatpush1.bf16.msra.mxu0 0
    %511 = vmatprep.subr.bf16.mxu0 0
    %512 = vmatpush1.bf16.msra.mxu0 0
    %513 = vmatprep.subr.bf16.mxu0 0
    %514 = vmatpush1.bf16.msra.mxu0 0
    %515 = vmatprep.subr.bf16.mxu0 0
    %516 = vmatpush1.bf16.msra.mxu0 0
    %517 = vmatprep.subr.bf16.mxu0 0
    %518 = vmatpush1.bf16.msra.mxu0 0
    %519 = vmatprep.subr.bf16.mxu0 0
    %520 = vmatpush1.bf16.msra.mxu0 0
    %521 = vmatprep.subr.bf16.mxu0 0
    %522 = vmatpush1.bf16.msra.mxu0 0
    %523 = vmatprep.subr.bf16.mxu0 0
    %524 = vmatpush1.bf16.msra.mxu0 0
    %525 = vmatprep.subr.bf16.mxu0 0
    %526 = vmatpush1.bf16.msra.mxu0 0
    %527 = vmatprep.subr.bf16.mxu0 0
    %528 = vmatpush1.bf16.msra.mxu0 0
    %529 = vmatprep.subr.bf16.mxu0 0
    %530 = vmatpush1.bf16.msra.mxu0 0
    %531 = vmatprep.subr.bf16.mxu0 0
    %532 = vmatpush1.bf16.msra.mxu0 0
    %533 = vmatprep.mubr.bf16.mxu0 0
    %534 = vmatmul.mubr.bf16.gmra.mrb[0].mxu0 %v342
    %v535 = vpop.f32.mrb[0].mxu0
    %v536 = vadd.f32 %v312, %v535
    %v537 = vpop.f32.mrb[0].mxu0
    %v538 = vadd.f32 %v316, %v537
    %v539 = vpop.f32.mrb[0].mxu0
    %v540 = vpop.f32.mrb[0].mxu0
    %541 = vdwg.mxu0
    %542 = vmatprep.subr.bf16.mxu0 %v215
    %543 = vmatpush1.bf16.msra.mxu0 %v214
    %544 = vmatprep.subr.bf16.mxu0 %v226
    %545 = vmatpush1.bf16.msra.mxu0 %v225
    %546 = vmatprep.subr.bf16.mxu0 %v237
    %547 = vmatpush1.bf16.msra.mxu0 %v236
    %548 = vmatprep.subr.bf16.mxu0 %v373
    %549 = vmatpush1.bf16.msra.mxu0 %v370
    %550 = vmatprep.subr.bf16.mxu0 0
    %551 = vmatpush1.bf16.msra.mxu0 0
    %552 = vmatprep.subr.bf16.mxu0 0
    %553 = vmatpush1.bf16.msra.mxu0 0
    %554 = vmatprep.subr.bf16.mxu0 0
    %555 = vmatpush1.bf16.msra.mxu0 0
    %556 = vmatprep.subr.bf16.mxu0 0
    %557 = vmatpush1.bf16.msra.mxu0 0
    %558 = vmatprep.subr.bf16.mxu0 0
    %559 = vmatpush1.bf16.msra.mxu0 0
    %560 = vmatprep.subr.bf16.mxu0 0
    %561 = vmatpush1.bf16.msra.mxu0 0
    %562 = vmatprep.subr.bf16.mxu0 0
    %563 = vmatpush1.bf16.msra.mxu0 0
    %564 = vmatprep.subr.bf16.mxu0 0
    %565 = vmatpush1.bf16.msra.mxu0 0
    %566 = vmatprep.subr.bf16.mxu0 0
    %567 = vmatpush1.bf16.msra.mxu0 0
    %568 = vmatprep.subr.bf16.mxu0 0
    %569 = vmatpush1.bf16.msra.mxu0 0
    %570 = vmatprep.subr.bf16.mxu0 0
    %571 = vmatpush1.bf16.msra.mxu0 0
    %572 = vmatprep.subr.bf16.mxu0 0
    %573 = vmatpush1.bf16.msra.mxu0 0
    %574 = vmatprep.mubr.bf16.mxu0 0
    %575 = vmatmul.mubr.bf16.gmra.mrb[0].mxu0 %v342
    %v576 = vpop.f32.mrb[0].mxu0
    %v577 = vadd.f32 %v320, %v576
    %v578 = vpop.f32.mrb[0].mxu0
    %v579 = vadd.f32 %v324, %v578
    %v580 = vpop.f32.mrb[0].mxu0
    %v581 = vpop.f32.mrb[0].mxu0
    %582 = vdwg.mxu0
    %583 = vmatprep.subr.bf16.mxu0 0
    %584 = vmatpush1.bf16.msra.mxu0 %v216
    %585 = vmatprep.subr.bf16.mxu0 0
    %586 = vmatpush1.bf16.msra.mxu0 %v227
    %587 = vmatprep.subr.bf16.mxu0 0
    %588 = vmatpush1.bf16.msra.mxu0 %v238
    %589 = vmatprep.subr.bf16.mxu0 0
    %590 = vmatpush1.bf16.msra.mxu0 %v376
    %591 = vmatprep.subr.bf16.mxu0 0
    %592 = vmatpush1.bf16.msra.mxu0 0
    %593 = vmatprep.subr.bf16.mxu0 0
    %594 = vmatpush1.bf16.msra.mxu0 0
    %595 = vmatprep.subr.bf16.mxu0 0
    %596 = vmatpush1.bf16.msra.mxu0 0
    %597 = vmatprep.subr.bf16.mxu0 0
    %598 = vmatpush1.bf16.msra.mxu0 0
    %599 = vmatprep.subr.bf16.mxu0 0
    %600 = vmatpush1.bf16.msra.mxu0 0
    %601 = vmatprep.subr.bf16.mxu0 0
    %602 = vmatpush1.bf16.msra.mxu0 0
    %603 = vmatprep.subr.bf16.mxu0 0
    %604 = vmatpush1.bf16.msra.mxu0 0
    %605 = vmatprep.subr.bf16.mxu0 0
    %606 = vmatpush1.bf16.msra.mxu0 0
    %607 = vmatprep.subr.bf16.mxu0 0
    %608 = vmatpush1.bf16.msra.mxu0 0
    %609 = vmatprep.subr.bf16.mxu0 0
    %610 = vmatpush1.bf16.msra.mxu0 0
    %611 = vmatprep.subr.bf16.mxu0 0
    %612 = vmatpush1.bf16.msra.mxu0 0
    %613 = vmatprep.subr.bf16.mxu0 0
    %614 = vmatpush1.bf16.msra.mxu0 0
    %615 = vmatprep.mubr.bf16.mxu0 0
    %616 = vmatmul.mubr.bf16.gmra.mrb[0].mxu0 %v342
    %v617 = vpop.f32.mrb[0].mxu0
    %v618 = vadd.f32 %v328, %v617
    %v619 = vpop.f32.mrb[0].mxu0
    %v620 = vpop.f32.mrb[0].mxu0
    %v621 = vpop.f32.mrb[0].mxu0
    %622 = vdwg.mxu0
    %v634 = vcombine.low %v413, %v415
    %v635 = vcombine.low %v454, %v456
    %v636 = vcombine.low %v495, %v497
    %v637 = vcombine.low %v536, %v538
    %v639 = vunpack.c.l.s4 1966171168
    %v640 = vunpack.c.0.s8 %v639
    %v641 = vlaneseq
    %v642 = vshrl.u32 %v641, 7
    %v643 = vsub.s32 %v640, %v642
    %v644 = vrot.slane %v634, %v643
    %v646 = vunpack.c.l.s4 1966171168
    %v647 = vunpack.c.0.s8 %v646
    %v648 = vlaneseq
    %v649 = vshrl.u32 %v648, 7
    %v650 = vsub.s32 %v647, %v649
    %v651 = vrot.slane %v635, %v650
    %v653 = vunpack.c.l.s4 1966171168
    %v654 = vunpack.c.0.s8 %v653
    %v655 = vlaneseq
    %v656 = vshrl.u32 %v655, 7
    %v657 = vsub.s32 %v654, %v656
    %v658 = vrot.slane %v636, %v657
    %v660 = vunpack.c.l.s4 1966171168
    %v661 = vunpack.c.0.s8 %v660
    %v662 = vlaneseq
    %v663 = vshrl.u32 %v662, 7
    %v664 = vsub.s32 %v661, %v663
    %v665 = vrot.slane %v637, %v664
    %v666 = vcombine.low %v644, %v651
    %v667 = vcombine.low %v658, %v665
    %v669 = vunpack.c.l.s4 1966171168
    %v670 = vunpack.c.0.s8 %v669
    %v671 = vlaneseq
    %v672 = vshrl.u32 %v671, 7
    %v673 = vsub.s32 %v670, %v672
    %v674 = vrot.slane %v666, %v673
    %v676 = vunpack.c.l.s4 1966171168
    %v677 = vunpack.c.0.s8 %v676
    %v678 = vlaneseq
    %v679 = vshrl.u32 %v678, 7
    %v680 = vsub.s32 %v677, %v679
    %v681 = vrot.slane %v667, %v680
    %v682 = vcombine.low %v674, %v681
    %v683 = vcombine.low %v577, %v579
    %v685 = vunpack.c.l.s4 1966171168
    %v686 = vunpack.c.0.s8 %v685
    %v687 = vlaneseq
    %v688 = vshrl.u32 %v687, 7
    %v689 = vsub.s32 %v686, %v688
    %v690 = vrot.slane %v683, %v689
    %v692 = vunpack.c.l.s4 1966171168
    %v693 = vunpack.c.0.s8 %v692
    %v694 = vlaneseq
    %v695 = vshrl.u32 %v694, 7
    %v696 = vsub.s32 %v693, %v695
    %v697 = vrot.slane %v618, %v696
    %v698 = vcombine.low %v690, %v697
    %v700 = vunpack.c.l.s4 1966171168
    %v701 = vunpack.c.0.s8 %v700
    %v702 = vlaneseq
    %v703 = vshrl.u32 %v702, 7
    %v704 = vsub.s32 %v701, %v703
    %v705 = vrot.slane %v698, %v704
    %708 = vst [vmem:[%s3] sm:$0xff] %v682
    %v709 = vlaneseq
    %vm710 = vcmp.ge.s32.totalorder %v709, 0
    %vm711 = vcmp.lt.s32.totalorder %v709, 384
    %vm712 = vmand %vm710, %vm711
    %713 = vst.msk [vmem:[%s3 + $0x8] sm:$0x7] %vm712, %v705
    // Predicated region
    $region22: #{conv2d_1x1.1} parent=1 // pred_check
      _
    $region23: #{conv2d_1x1.1} parent=1 // pred_check_branch
      %715 = sbr.rel (0) target = $region25
    $region24: #{conv2d_1x1.1} parent=1 // pred_region
      _
    $region25: #{conv2d_1x1.1} parent=1 // pred_fallthru
      _
    // Predicated region
    $region26: #{conv2d_1x1.1} parent=1 // pred_check
      _
    $region27: #{conv2d_1x1.1} parent=1 // pred_check_branch
      %717 = sbr.rel (0) target = $region29
    $region28: #{conv2d_1x1.1} parent=1 // pred_region
      _
    $region29: #{conv2d_1x1.1} parent=1 // pred_fallthru
      _
    %718 = vsyncpa [#allocation3], 1
    %719 = vsyncpa [#allocation5], 1

</llo_original>
